<compile_context>
chip_gen: v7x
topology: tpu7x:2x2x1
jax: 0.10.0
libtpu: 0.0.40
codegen_flags: <defaults>
</compile_context>

<pallas_src>
import math

import jax
import jax.numpy as jnp
import numpy as np
from jax.experimental import pallas as pl
from jax.experimental.pallas import tpu as pltpu

_BF16 = jnp.bfloat16
_VMEM_LIMIT_BYTES = 32 * 1024 * 1024


# ----------------------------------------------------------------------------
# helpers
# ----------------------------------------------------------------------------
def _round_up(v, m):
    return ((v + m - 1) // m) * m


def _itemsize(dt):
    return np.dtype(dt).itemsize


def _block_budget_bytes():
    """Per-block byte budget: roomier on v6e (128 MiB VMEM), conservative on
    v5e (16 MiB scoped default) and v7x (64 MiB physical)."""
    try:
        kind = jax.devices()[0].device_kind.lower()
    except Exception:
        kind = ""
    return (8 << 20) if "v6" in kind else (4 << 20)


def _rows_per_tile(m, bytes_per_row, target_rows=2048, max_block_bytes=None):
    """Rows per grid step for the flattened 1x1-conv kernel: multiple of 8,
    VMEM friendly, and >= 4 grid steps when possible (2 per v7x TensorCore)."""
    if max_block_bytes is None:
        max_block_bytes = _block_budget_bytes()
    cap = max(8, (max_block_bytes // max(bytes_per_row, 1)) // 8 * 8)
    tm = min(target_rows, cap, _round_up(m, 8))
    if m > 64:
        tm = min(tm, _round_up(pl.cdiv(m, 4), 8))
    return max(8, tm)


def _pick_row_tile(total, multiple, n_outer, per_row_bytes, budget=None,
                   min_steps=4, halo=2):
    """Largest row tile dividing `total`, multiple of `multiple`, fitting the
    byte budget, and (when possible) leaving >= min_steps total grid steps."""
    if budget is None:
        budget = _block_budget_bytes()
    cands = [c for c in range(multiple, total + 1, multiple) if total % c == 0]
    fit = [c for c in cands if (c + halo) * per_row_bytes <= budget] or [cands[0]]
    th = max(fit)
    for c in sorted(fit, reverse=True):
        if n_outer * (total // c) >= min_steps:
            th = c
            break
    return th


def nearest_resize_nhwc(x, out_h, out_w):
    """F.interpolate(mode='nearest'): src = floor(dst * in / out). Pure gather."""
    n, h, w, c = x.shape
    if (h, w) == (out_h, out_w):
        return x
    hi = (jnp.arange(out_h) * h) // out_h
    wi = (jnp.arange(out_w) * w) // out_w
    return x[:, hi][:, :, wi]


# ----------------------------------------------------------------------------
# Kernel A1: 1x1 conv (channel matmul) + folded BatchNorm  (no-fuse path)
# ----------------------------------------------------------------------------
def _conv1x1_bn_kernel(x_ref, w_ref, b_ref, o_ref):
    acc = jnp.dot(x_ref[...], w_ref[...], preferred_element_type=jnp.float32)
    o_ref[...] = (acc + b_ref[...]).astype(o_ref.dtype)


def conv1x1_bn(x_nhwc, w, scale, bias, out_dtype):
    n, h, wd, cin = x_nhwc.shape
    cmid = w.shape[1]
    w_f = (w * scale[None, :]).astype(_BF16)            # fold BN scale into weight
    b_f = bias[None, :].astype(jnp.float32)             # folded BN bias
    m = n * h * wd
    tm = _rows_per_tile(m, 2 * cin + 10 * cmid)
    x2 = x_nhwc.reshape(m, cin).astype(_BF16)           # free reshape; no pad / no slice
    out = pl.pallas_call(
        _conv1x1_bn_kernel,
        out_shape=jax.ShapeDtypeStruct((m, cmid), out_dtype),
        grid=(pl.cdiv(m, tm),),                          # partial last block is masked
        in_specs=[
            pl.BlockSpec((tm, cin), lambda i: (i, 0)),
            pl.BlockSpec((cin, cmid), lambda i: (0, 0)),
            pl.BlockSpec((1, cmid), lambda i: (0, 0)),
        ],
        out_specs=pl.BlockSpec((tm, cmid), lambda i: (i, 0)),
        compiler_params=pltpu.CompilerParams(
            dimension_semantics=("parallel",), vmem_limit_bytes=_VMEM_LIMIT_BYTES),
        cost_estimate=pl.CostEstimate(
            flops=2 * m * cin * cmid, transcendentals=0,
            bytes_accessed=2 * m * cin + m * cmid * _itemsize(out_dtype)
                           + 2 * cin * cmid),
    )(x2, w_f, b_f)
    return out.reshape(n, h, wd, cmid)


# ----------------------------------------------------------------------------
# Kernel A2: 1x1 conv + BN + (fused nearest-upsample of the residual) +
#            attention conv (sigmoid gates) + weighted fusion, in one kernel.
# ----------------------------------------------------------------------------
def _make_conv1_att_kernel(th, iw, sy, ywy, ry_h, ry_w):
    rows = th * iw

    def kernel(x_ref, y_ref, w1_ref, wa_ref, b1_ref, ab_ref, awy_ref, o_ref):
        cin = x_ref.shape[-1]
        cmid = o_ref.shape[-1]
        x = x_ref[0].reshape(rows, cin)
        # nearest-upsample of the residual entirely in VMEM (no HBM round trip)
        y3 = y_ref[0]
        if ry_w > 1:
            y3 = jnp.broadcast_to(y3[:, :, None, :],
                                  (sy, ywy, ry_w, cmid)).reshape(sy, iw, cmid)
        if ry_h > 1:
            y3 = jnp.broadcast_to(y3[:, None, :, :],
                                  (sy, ry_h, iw, cmid)).reshape(th, iw, cmid)
        yf = y3.reshape(rows, cmid).astype(jnp.float32)
        # 1x1 conv + folded BN on the MXU; x-side attention weights are folded
        # into a second tiny (cin x 2) matmul instead of full-tile VPU work.
        x1 = jnp.dot(x, w1_ref[...], preferred_element_type=jnp.float32) + b1_ref[...]
        lx = jnp.dot(x, wa_ref[...], preferred_element_type=jnp.float32)     # (rows, 2)
        l0 = (lx[:, 0:1] + ab_ref[0:1, 0:1]
              + jnp.sum(yf * awy_ref[0:1, :], axis=-1, keepdims=True))
        l1 = (lx[:, 1:2] + ab_ref[0:1, 1:2]
              + jnp.sum(yf * awy_ref[1:2, :], axis=-1, keepdims=True))
        z0 = jax.nn.sigmoid(l0)
        z1 = jax.nn.sigmoid(l1)
        o_ref[...] = (x1 * z0 + yf * z1).reshape(1, th, iw, cmid).astype(o_ref.dtype)

    return kernel


def conv1x1_bn_att(x_nhwc, y_nhwc, w, scale, bias, att_wx, att_wy, att_b, out_dtype):
    n, h, wd, cin = x_nhwc.shape
    cmid = w.shape[1]
    assert y_nhwc.shape[0] == n and y_nhwc.shape[-1] == cmid, (x_nhwc.shape, y_nhwc.shape)

    w1 = (w * scale[None, :]).astype(jnp.float32)                  # fold BN scale
    b1 = bias.astype(jnp.float32)
    wa = jnp.dot(w1, att_wx.astype(jnp.float32))                   # fold x-side attention
    ab = (att_b.astype(jnp.float32) + jnp.dot(b1, att_wx))[None, :]
    awy = att_wy.T.astype(jnp.float32)                             # (2, cmid) for lane reduces

    x = x_nhwc.astype(_BF16)
    y = y_nhwc.astype(_BF16)
    hy, wy = y.shape[1], y.shape[2]
    if (hy, wy) != (h, wd) and not (h % hy == 0 and wd % wy == 0):
        # TODO(synk): non-integer nearest ratios stay an XLA gather fallback
        y = nearest_resize_nhwc(y, h, wd)
        hy, wy = h, wd
    ry_h, ry_w = h // hy, wd // wy

    per_row = wd * (2 * cin + 14 * cmid)
    th = _pick_row_tile(h, ry_h, n, per_row, halo=0)
    sy = th // ry_h
    n_t = h // th

    out = pl.pallas_call(
        _make_conv1_att_kernel(th, wd, sy, wy, ry_h, ry_w),
        out_shape=jax.ShapeDtypeStruct((n, h, wd, cmid), out_dtype),
        grid=(n, n_t),
        in_specs=[
            pl.BlockSpec((1, th, wd, cin), lambda b, t: (b, t, 0, 0)),
            pl.BlockSpec((1, sy, wy, cmid), lambda b, t: (b, t, 0, 0)),
            pl.BlockSpec((cin, cmid), lambda b, t: (0, 0)),
            pl.BlockSpec((cin, 2), lambda b, t: (0, 0)),
            pl.BlockSpec((1, cmid), lambda b, t: (0, 0)),
            pl.BlockSpec((1, 2), lambda b, t: (0, 0)),
            pl.BlockSpec((2, cmid), lambda b, t: (0, 0)),
        ],
        out_specs=pl.BlockSpec((1, th, wd, cmid), lambda b, t: (b, t, 0, 0)),
        compiler_params=pltpu.CompilerParams(
            dimension_semantics=("parallel", "parallel"),
            vmem_limit_bytes=_VMEM_LIMIT_BYTES),
        cost_estimate=pl.CostEstimate(
            flops=2 * n * h * wd * cin * (cmid + 2) + 12 * n * h * wd * cmid,
            transcendentals=2 * n * h * wd,
            bytes_accessed=2 * n * (h * wd * cin + hy * wy * cmid)
                           + n * h * wd * cmid * _itemsize(out_dtype)),
    )(x, y, w1.astype(_BF16), wa.astype(_BF16), b1[None, :], ab, awy)
    return out


# ----------------------------------------------------------------------------
# Kernel B: fused nearest-upsample (integer ratio) + 3x3 conv (pad 1) + BN,
#           tiled over output rows with a 1-row halo.
# ----------------------------------------------------------------------------
def _make_conv3x3_kernel(h, w, rh, rw, th, n_t, emit_up):
    H, W = h * rh, w * rw
    sh = th // rh                            # source rows per output-row tile
    Wp = _round_up(W + 2, 8)                 # 8-aligned padded width -> aligned im2col slices

    def widen(rows, nr):
        if rw == 1:
            return rows
        cin = rows.shape[-1]
        return jnp.broadcast_to(rows[:, :, None, :], (nr, w, rw, cin)).reshape(nr, W, cin)

    def kernel(x_ref, w_ref, b_ref, *refs):
        if emit_up:
            up_ref, o_ref, xpad = refs
        else:
            o_ref, xpad = refs
        cin = x_ref.shape[-1]
        cout = o_ref.shape[-1]
        t = pl.program_id(1)

        # interior: upsample source rows [t*sh, (t+1)*sh) -> th output rows
        src = x_ref[0, pl.ds(t * sh, sh)].astype(_BF16)            # (sh, w, cin)
        src = widen(src, sh)                                       # (sh, W, cin)
        if rh > 1:
            up = jnp.broadcast_to(src[:, None, :, :], (sh, rh, W, cin)).reshape(th, W, cin)
        else:
            up = src
        if emit_up:
            up_ref[...] = up[None].astype(up_ref.dtype)

        # fill the padded scratch: interior + halo rows; zero ONLY the 1-pixel
        # column border every step (megacore-safe, no full-scratch zeroing).
        xpad[1:th + 1, 1:W + 1, :] = up
        top = widen(x_ref[0, pl.ds(jnp.maximum(t * sh - 1, 0), 1)].astype(_BF16), 1)
        bot = widen(x_ref[0, pl.ds(jnp.minimum((t + 1) * sh, h - 1), 1)].astype(_BF16), 1)
        xpad[0:1, 1:W + 1, :] = jnp.where(t > 0, top, jnp.zeros_like(top))
        xpad[th + 1:th + 2, 1:W + 1, :] = jnp.where(t < n_t - 1, bot, jnp.zeros_like(bot))
        xpad[:, 0:1, :] = jnp.zeros((th + 2, 1, cin), xpad.dtype)
        xpad[:, W + 1:Wp, :] = jnp.zeros((th + 2, Wp - W - 1, cin), xpad.dtype)

        # 3x3 conv: 9 matmuls over full padded rows.  All LHS slices start at
        # multiples of Wp (8-aligned) so there are no unaligned input relayouts;
        # the column shift is applied on the per-kj accumulator instead.
        xp = xpad[...].reshape((th + 2) * Wp, cin)
        out3 = jnp.zeros((th, W, cout), jnp.float32)
        for kj in range(3):
            accj = jnp.zeros((th * Wp, cout), jnp.float32)
            for ki in range(3):
                accj = accj + jnp.dot(xp[ki * Wp:ki * Wp + th * Wp],
                                      w_ref[3 * ki + kj],
                                      preferred_element_type=jnp.float32)
            out3 = out3 + accj.reshape(th, Wp, cout)[:, kj:kj + W, :]
        o_ref[...] = (out3 + b_ref[...])[None].astype(o_ref.dtype)

    return kernel


def conv3x3_bn(x_nhwc, w_hwio, scale, bias, *, rh=1, rw=1, emit_up=False, out_dtype=None):
    """Returns (conv_out, upsampled_input_or_None)."""
    n, h, wd, cin = x_nhwc.shape
    cout = w_hwio.shape[-1]
    if out_dtype is None:
        out_dtype = x_nhwc.dtype
    H, W = h * rh, wd * rw
    Wp = _round_up(W + 2, 8)
    ob = _itemsize(out_dtype)
    # fold BN scale (broadcast on Cout), HWIO -> (9, cin, cout), bf16 for the MXU
    w_f = (w_hwio * scale).astype(_BF16).reshape(9, cin, cout)
    b_f = bias[None, :].astype(jnp.float32)

    per_row = (Wp * cin * 2                       # xpad scratch (bf16)
               + Wp * cout * 4 + W * cout * 4     # per-kj accumulator + out accumulator (f32)
               + 2 * W * cout * ob                # conv-out block (double buffered)
               + (2 * W * cin * ob if emit_up else 0))
    fixed = 2 * h * wd * cin * x_nhwc.dtype.itemsize   # resident source image (2 buffers)
    budget = max(_block_budget_bytes() - fixed, 1)
    th = _pick_row_tile(H, rh, n, per_row, budget=budget)
    n_t = H // th

    out_shapes, out_specs = [], []
    if emit_up:
        out_shapes.append(jax.ShapeDtypeStruct((n, H, W, cin), out_dtype))
        out_specs.append(pl.BlockSpec((1, th, W, cin), lambda b, t: (b, t, 0, 0)))
    out_shapes.append(jax.ShapeDtypeStruct((n, H, W, cout), out_dtype))
    out_specs.append(pl.BlockSpec((1, th, W, cout), lambda b, t: (b, t, 0, 0)))

    res = pl.pallas_call(
        _make_conv3x3_kernel(h, wd, rh, rw, th, n_t, emit_up),
        out_shape=tuple(out_shapes),
        grid=(n, n_t),
        in_specs=[
            # full source image per batch element; resident across the H-tiles
            pl.BlockSpec((1, h, wd, cin), lambda b, t: (b, 0, 0, 0)),
            pl.BlockSpec((9, cin, cout), lambda b, t: (0, 0, 0)),
            pl.BlockSpec((1, cout), lambda b, t: (0, 0)),
        ],
        out_specs=tuple(out_specs),
        scratch_shapes=[pltpu.VMEM((th + 2, Wp, cin), _BF16)],
        compiler_params=pltpu.CompilerParams(
            dimension_semantics=("parallel", "arbitrary"),
            vmem_limit_bytes=_VMEM_LIMIT_BYTES),
        cost_estimate=pl.CostEstimate(
            flops=2 * n * H * Wp * 9 * cin * cout, transcendentals=0,
            bytes_accessed=n * h * wd * cin * x_nhwc.dtype.itemsize
                           + n * H * W * cout * ob
                           + (n * H * W * cin * ob if emit_up else 0)
                           + 9 * cin * cout * 2),
    )(x_nhwc, w_f, b_f)
    if emit_up:
        up, out = res
        return out, up
    return res[0], None


# ----------------------------------------------------------------------------
# Parameter init (deterministic, matching the shapes in ABF.__init__)
# ----------------------------------------------------------------------------
def init_abf_params(key, in_channel, mid_channel, out_channel, fuse):
    eps = 1e-5
    k1, k2, k3, k4 = jax.random.split(key, 4)
    b1 = math.sqrt(3.0 / in_channel)                    # kaiming_uniform_(a=1)
    conv1_w = jax.random.uniform(k1, (in_channel, mid_channel), jnp.float32, -b1, b1)
    b2 = math.sqrt(3.0 / (mid_channel * 9))
    conv2_w = jax.random.uniform(k2, (3, 3, mid_channel, out_channel),
                                 jnp.float32, -b2, b2)
    # eval-mode BatchNorm with default stats (gamma=1, beta=0, mean=0, var=1), folded
    bn1_scale = jnp.ones((mid_channel,), jnp.float32) / jnp.sqrt(1.0 + eps)
    bn1_bias = jnp.zeros((mid_channel,), jnp.float32)
    bn2_scale = jnp.ones((out_channel,), jnp.float32) / jnp.sqrt(1.0 + eps)
    bn2_bias = jnp.zeros((out_channel,), jnp.float32)
    params = dict(conv1_w=conv1_w, bn1_scale=bn1_scale, bn1_bias=bn1_bias,
                  conv2_w=conv2_w, bn2_scale=bn2_scale, bn2_bias=bn2_bias,
                  att_wx=None, att_wy=None, att_b=None)
    if fuse:
        fan_in = 2 * mid_channel
        ba = 1.0 / math.sqrt(fan_in)
        att_w = jax.random.uniform(k3, (2 * mid_channel, 2), jnp.float32, -ba, ba)
        att_b = jax.random.uniform(k4, (2,), jnp.float32, -ba, ba)
        params['att_wx'] = att_w[:mid_channel]
        params['att_wy'] = att_w[mid_channel:]
        params['att_b'] = att_b
    return params


# ----------------------------------------------------------------------------
# ABF forward
# ----------------------------------------------------------------------------
def abf_forward_nhwc(params, x, y=None, shape=None, out_shape=None, out_dtype=None):
    """NHWC entry point (no NCHW<->NHWC HBM round trips). Returns (conv2_out, fused_feature)."""
    if out_dtype is None:
        out_dtype = x.dtype
    n, h, wd, _ = x.shape
    fuse = params['att_wx'] is not None and y is not None

    need_resize = out_shape is not None and wd != out_shape    # PyTorch checks width
    int_resize = need_resize and out_shape % h == 0 and out_shape % wd == 0
    # internal conv1->conv2 handoff stays bf16 when the feature is re-emitted by kernel B
    x1_dtype = _BF16 if int_resize else out_dtype

    if fuse:
        if shape is not None:
            assert shape == h and shape == wd, "residual target must match x's spatial dims"
        x1 = conv1x1_bn_att(x, y, params['conv1_w'], params['bn1_scale'],
                            params['bn1_bias'], params['att_wx'], params['att_wy'],
                            params['att_b'], out_dtype=x1_dtype)
    else:
        x1 = conv1x1_bn(x, params['conv1_w'], params['bn1_scale'], params['bn1_bias'],
                        out_dtype=x1_dtype)

    if int_resize:
        # integer-ratio upsample fused into the conv2 kernel; the upsampled
        # feature is emitted as a second output (the module returns it anyway)
        y_out, x_up = conv3x3_bn(x1, params['conv2_w'], params['bn2_scale'],
                                 params['bn2_bias'], rh=out_shape // h,
                                 rw=out_shape // wd, emit_up=True, out_dtype=out_dtype)
        return y_out, x_up
    if need_resize:
        # TODO(synk): non-integer upsample ratios stay an XLA nearest gather
        x1 = nearest_resize_nhwc(x1, out_shape, out_shape)
    y_out, _ = conv3x3_bn(x1, params['conv2_w'], params['bn2_scale'],
                          params['bn2_bias'], rh=1, rw=1, emit_up=False,
                          out_dtype=out_dtype)
    return y_out, x1


def abf_forward(params, x_nchw, y_nchw=None, shape=None, out_shape=None):
    """NCHW interface mirroring the PyTorch module. The bf16 cast is fused into
    the boundary transposes so the extra HBM pass is half-width."""
    out_dtype = x_nchw.dtype
    x = jnp.transpose(x_nchw, (0, 2, 3, 1)).astype(_BF16)
    y = jnp.transpose(y_nchw, (0, 2, 3, 1)).astype(_BF16) if y_nchw is not None else None
    y_out, x_feat = abf_forward_nhwc(params, x, y, shape=shape, out_shape=out_shape,
                                     out_dtype=out_dtype)
    return (jnp.transpose(y_out, (0, 3, 1, 2)),             # conv2 output, NCHW
            jnp.transpose(x_feat, (0, 3, 1, 2)))            # fused feature, NCHW


# ----------------------------------------------------------------------------
# Pure-JAX reference (for correctness checking only)
# ----------------------------------------------------------------------------
def _abf_reference(params, x_nchw, y_nchw, shape, out_shape):
    hi = jax.lax.Precision.HIGHEST
    x = jnp.transpose(x_nchw, (0, 2, 3, 1)).astype(jnp.float32)
    w1 = params['conv1_w'] * params['bn1_scale'][None, :]
    x1 = jnp.einsum('nhwc,cd->nhwd', x, w1, precision=hi) + params['bn1_bias']
    if params['att_wx'] is not None and y_nchw is not None:
        y = jnp.transpose(y_nchw, (0, 2, 3, 1)).astype(jnp.float32)
        y = nearest_resize_nhwc(y, shape, shape)
        z = (jnp.einsum('nhwc,cd->nhwd', x1, params['att_wx'], precision=hi)
             + jnp.einsum('nhwc,cd->nhwd', y, params['att_wy'], precision=hi)
             + params['att_b'])
        z = jax.nn.sigmoid(z)
        x1 = x1 * z[..., 0:1] + y * z[..., 1:2]
    if out_shape is not None and x1.shape[2] != out_shape:
        x1 = nearest_resize_nhwc(x1, out_shape, out_shape)
    w2 = (params['conv2_w'] * params['bn2_scale']).astype(jnp.float32)
    yo = jax.lax.conv_general_dilated(
        x1, w2, window_strides=(1, 1), padding='SAME',
        dimension_numbers=('NHWC', 'HWIO', 'NHWC'), precision=hi) + params['bn2_bias']
    return jnp.transpose(yo, (0, 3, 1, 2)), jnp.transpose(x1, (0, 3, 1, 2))


if __name__ == "__main__":
    key = jax.random.PRNGKey(0)
    n, in_channel, mid_channel, out_channel = 2, 8, 16, 16
    h = w = 8
    shape = 8          # target spatial size for the residual y (nearest upsample)
    out_shape = 16     # final spatial size fed to conv2
    kx, ky, kp, kp2 = jax.random.split(key, 4)
    x = jax.random.normal(kx, (n, in_channel, h, w), jnp.float32)
    y = jax.random.normal(ky, (n, mid_channel, 4, 4), jnp.float32)   # coarser residual

    # fused path: conv1+BN+attention (in-kernel residual upsample), then fused
    # 2x upsample + 3x3 conv + BN tiled over output rows.
    params = init_abf_params(kp, in_channel, mid_channel, out_channel, fuse=True)
    out_y, out_x = abf_forward(params, x, y, shape=shape, out_shape=out_shape)
    out_y = jax.block_until_ready(out_y)
    out_x = jax.block_until_ready(out_x)
    assert out_y.shape == (n, out_channel, out_shape, out_shape), out_y.shape
    assert out_x.shape == (n, mid_channel, out_shape, out_shape), out_x.shape
    ref_y, ref_x = _abf_reference(params, x, y, shape, out_shape)
    assert bool(jnp.allclose(out_x, ref_x, rtol=8e-2, atol=8e-2)), "fused feature mismatch"
    assert bool(jnp.allclose(out_y, ref_y, rtol=8e-2, atol=8e-2)), "conv2 output mismatch"

    # non-fused path: conv1+BN only, no resize before conv2
    params_nf = init_abf_params(kp2, in_channel, mid_channel, out_channel, fuse=False)
    out_y2, out_x2 = abf_forward(params_nf, x, out_shape=h)
    out_y2 = jax.block_until_ready(out_y2)
    out_x2 = jax.block_until_ready(out_x2)
    ref_y2, ref_x2 = _abf_reference(params_nf, x, None, None, h)
    assert out_y2.shape == (n, out_channel, h, w), out_y2.shape
    assert bool(jnp.allclose(out_x2, ref_x2, rtol=8e-2, atol=8e-2)), "plain feature mismatch"
    assert bool(jnp.allclose(out_y2, ref_y2, rtol=8e-2, atol=8e-2)), "plain conv2 mismatch"

    print("KERNEL_OK")
</pallas_src>

<mosaic_0001>
module attributes {stable_mosaic.version = 11 : i64} {
  func.func @kernel(%arg0: i32, %arg1: i32, %arg2: memref<1x4x8x8xbf16, #tpu.memory_space<vmem>>, %arg3: memref<1x2x4x16xbf16, #tpu.memory_space<vmem>>, %arg4: memref<8x16xbf16, #tpu.memory_space<vmem>>, %arg5: memref<8x2xbf16, #tpu.memory_space<vmem>>, %arg6: memref<1x16xf32, #tpu.memory_space<vmem>>, %arg7: memref<1x2xf32, #tpu.memory_space<vmem>>, %arg8: memref<2x16xf32, #tpu.memory_space<vmem>>, %arg9: memref<1x4x8x16xbf16, #tpu.memory_space<vmem>>) attributes {dimension_semantics = [#tpu.dimension_semantics<parallel>, #tpu.dimension_semantics<parallel>], iteration_bounds = array<i64: 2, 2>, scalar_prefetch = 0 : i64, scratch_operands = 0 : i64, tpu.core_type = #tpu.core_type<tc>, window_params = [{transform_indices = @transform_0, window_bounds = array<i64: 1, 4, 8, 8>}, {transform_indices = @transform_1, window_bounds = array<i64: 1, 2, 4, 16>}, {pipeline_mode = #tpu.pipeline_mode<synchronous>, transform_indices = @transform_2, window_bounds = array<i64: 8, 16>}, {pipeline_mode = #tpu.pipeline_mode<synchronous>, transform_indices = @transform_3, window_bounds = array<i64: 8, 2>}, {pipeline_mode = #tpu.pipeline_mode<synchronous>, transform_indices = @transform_4, window_bounds = array<i64: 1, 16>}, {pipeline_mode = #tpu.pipeline_mode<synchronous>, transform_indices = @transform_5, window_bounds = array<i64: 1, 2>}, {pipeline_mode = #tpu.pipeline_mode<synchronous>, transform_indices = @transform_6, window_bounds = array<i64: 2, 16>}, {transform_indices = @transform_7, window_bounds = array<i64: 1, 4, 8, 16>}]} {
    %c0 = arith.constant 0 : index
    %c0_0 = arith.constant 0 : index
    %c0_1 = arith.constant 0 : index
    %c0_2 = arith.constant 0 : index
    %0 = vector.load %arg2[%c0, %c0_0, %c0_1, %c0_2] : memref<1x4x8x8xbf16, #tpu.memory_space<vmem>>, vector<1x4x8x8xbf16>
    %1 = vector.shape_cast %0 : vector<1x4x8x8xbf16> to vector<4x8x8xbf16>
    %2 = vector.shape_cast %1 : vector<4x8x8xbf16> to vector<32x8xbf16>
    %c0_3 = arith.constant 0 : index
    %c0_4 = arith.constant 0 : index
    %c0_5 = arith.constant 0 : index
    %c0_6 = arith.constant 0 : index
    %3 = vector.load %arg3[%c0_3, %c0_4, %c0_5, %c0_6] : memref<1x2x4x16xbf16, #tpu.memory_space<vmem>>, vector<1x2x4x16xbf16>
    %4 = vector.shape_cast %3 : vector<1x2x4x16xbf16> to vector<2x4x16xbf16>
    %5 = vector.shape_cast %4 : vector<2x4x16xbf16> to vector<2x4x1x16xbf16>
    %6 = vector.shape_cast %5 : vector<2x4x1x16xbf16> to vector<2x4x1x16xbf16>
    %7 = vector.broadcast %6 : vector<2x4x1x16xbf16> to vector<2x4x2x16xbf16>
    %8 = vector.shape_cast %7 : vector<2x4x2x16xbf16> to vector<2x8x16xbf16>
    %9 = vector.shape_cast %8 : vector<2x8x16xbf16> to vector<2x1x8x16xbf16>
    %10 = vector.shape_cast %9 : vector<2x1x8x16xbf16> to vector<2x1x8x16xbf16>
    %11 = vector.broadcast %10 : vector<2x1x8x16xbf16> to vector<2x2x8x16xbf16>
    %12 = vector.shape_cast %11 : vector<2x2x8x16xbf16> to vector<4x8x16xbf16>
    %13 = vector.shape_cast %12 : vector<4x8x16xbf16> to vector<32x16xbf16>
    %14 = arith.extf %13 : vector<32x16xbf16> to vector<32x16xf32>
    %c0_7 = arith.constant 0 : index
    %c0_8 = arith.constant 0 : index
    %15 = vector.load %arg4[%c0_7, %c0_8] : memref<8x16xbf16, #tpu.memory_space<vmem>>, vector<8x16xbf16>
    %cst = arith.constant dense<0.000000e+00> : vector<32x16xf32>
    %16 = tpu.matmul %2, %15, %cst {dimension_numbers = #tpu.dot_dimension_numbers<[1], [0], [0], [1], [0, 0, 1, 1], [], []>} : vector<32x8xbf16>, vector<8x16xbf16>, vector<32x16xf32> -> vector<32x16xf32>
    %c0_9 = arith.constant 0 : index
    %c0_10 = arith.constant 0 : index
    %17 = vector.load %arg6[%c0_9, %c0_10] : memref<1x16xf32, #tpu.memory_space<vmem>>, vector<1x16xf32>
    %18 = vector.broadcast %17 : vector<1x16xf32> to vector<32x16xf32>
    %19 = arith.addf %16, %18 : vector<32x16xf32>
    %c0_11 = arith.constant 0 : index
    %c0_12 = arith.constant 0 : index
    %20 = vector.load %arg5[%c0_11, %c0_12] : memref<8x2xbf16, #tpu.memory_space<vmem>>, vector<8x2xbf16>
    %cst_13 = arith.constant dense<0.000000e+00> : vector<32x2xf32>
    %21 = tpu.matmul %2, %20, %cst_13 {dimension_numbers = #tpu.dot_dimension_numbers<[1], [0], [0], [1], [0, 0, 1, 1], [], []>} : vector<32x8xbf16>, vector<8x2xbf16>, vector<32x2xf32> -> vector<32x2xf32>
    %22 = vector.extract_strided_slice %21 {offsets = [0, 0], sizes = [32, 1], strides = [1, 1]} : vector<32x2xf32> to vector<32x1xf32>
    %c0_14 = arith.constant 0 : index
    %c0_15 = arith.constant 0 : index
    %23 = vector.load %arg7[%c0_14, %c0_15] : memref<1x2xf32, #tpu.memory_space<vmem>>, vector<1x1xf32>
    %24 = vector.broadcast %23 : vector<1x1xf32> to vector<32x1xf32>
    %25 = arith.addf %22, %24 : vector<32x1xf32>
    %c0_16 = arith.constant 0 : index
    %c0_17 = arith.constant 0 : index
    %26 = vector.load %arg8[%c0_16, %c0_17] : memref<2x16xf32, #tpu.memory_space<vmem>>, vector<1x16xf32>
    %27 = vector.broadcast %26 : vector<1x16xf32> to vector<32x16xf32>
    %28 = arith.mulf %14, %27 : vector<32x16xf32>
    %cst_18 = arith.constant dense<0.000000e+00> : vector<32xf32>
    %29 = vector.multi_reduction <add>, %28, %cst_18 [1] : vector<32x16xf32> to vector<32xf32>
    %30 = vector.shape_cast %29 : vector<32xf32> to vector<32x1xf32>
    %31 = arith.addf %25, %30 : vector<32x1xf32>
    %32 = vector.extract_strided_slice %21 {offsets = [0, 1], sizes = [32, 1], strides = [1, 1]} : vector<32x2xf32> to vector<32x1xf32>
    %c0_19 = arith.constant 0 : index
    %c1 = arith.constant 1 : index
    %33 = vector.load %arg7[%c0_19, %c1] : memref<1x2xf32, #tpu.memory_space<vmem>>, vector<1x1xf32>
    %34 = vector.broadcast %33 : vector<1x1xf32> to vector<32x1xf32>
    %35 = arith.addf %32, %34 : vector<32x1xf32>
    %c1_20 = arith.constant 1 : index
    %c0_21 = arith.constant 0 : index
    %36 = vector.load %arg8[%c1_20, %c0_21] : memref<2x16xf32, #tpu.memory_space<vmem>>, vector<1x16xf32>
    %37 = vector.broadcast %36 : vector<1x16xf32> to vector<32x16xf32>
    %38 = arith.mulf %14, %37 : vector<32x16xf32>
    %cst_22 = arith.constant dense<0.000000e+00> : vector<32xf32>
    %39 = vector.multi_reduction <add>, %38, %cst_22 [1] : vector<32x16xf32> to vector<32xf32>
    %40 = vector.shape_cast %39 : vector<32xf32> to vector<32x1xf32>
    %41 = arith.addf %35, %40 : vector<32x1xf32>
    %42 = arith.negf %31 : vector<32x1xf32>
    %43 = math.exp %42 : vector<32x1xf32>
    %cst_23 = arith.constant 1.000000e+00 : f32
    %44 = vector.broadcast %cst_23 : f32 to vector<32x1xf32>
    %45 = arith.addf %44, %43 : vector<32x1xf32>
    %46 = arith.divf %44, %45 : vector<32x1xf32>
    %47 = arith.negf %41 : vector<32x1xf32>
    %48 = math.exp %47 : vector<32x1xf32>
    %cst_24 = arith.constant 1.000000e+00 : f32
    %49 = vector.broadcast %cst_24 : f32 to vector<32x1xf32>
    %50 = arith.addf %49, %48 : vector<32x1xf32>
    %51 = arith.divf %49, %50 : vector<32x1xf32>
    %52 = vector.broadcast %46 : vector<32x1xf32> to vector<32x16xf32>
    %53 = arith.mulf %19, %52 : vector<32x16xf32>
    %54 = vector.broadcast %51 : vector<32x1xf32> to vector<32x16xf32>
    %55 = arith.mulf %14, %54 : vector<32x16xf32>
    %56 = arith.addf %53, %55 : vector<32x16xf32>
    %57 = vector.shape_cast %56 : vector<32x16xf32> to vector<1x4x8x16xf32>
    %58 = arith.truncf %57 : vector<1x4x8x16xf32> to vector<1x4x8x16xbf16>
    %c0_25 = arith.constant 0 : index
    %c0_26 = arith.constant 0 : index
    %c0_27 = arith.constant 0 : index
    %c0_28 = arith.constant 0 : index
    %59 = vector.load %arg9[%c0_25, %c0_26, %c0_27, %c0_28] : memref<1x4x8x16xbf16, #tpu.memory_space<vmem>>, vector<1x4x8x16xbf16>
    tpu.vector_store %arg9[%c0_25, %c0_26, %c0_27, %c0_28], %58 {strides = array<i32>} : memref<1x4x8x16xbf16, #tpu.memory_space<vmem>>, vector<1x4x8x16xbf16>,
    return
  }
  func.func @transform_0(%arg0: i32, %arg1: i32) -> (i32, i32, i32, i32) {
    %c0_i32 = arith.constant 0 : i32
    %c0_i32_0 = arith.constant 0 : i32
    %c0_i32_1 = arith.constant 0 : i32
    return %arg0, %arg1, %c0_i32, %c0_i32_0 : i32, i32, i32, i32
  }
  func.func @transform_1(%arg0: i32, %arg1: i32) -> (i32, i32, i32, i32) {
    %c0_i32 = arith.constant 0 : i32
    %c0_i32_0 = arith.constant 0 : i32
    %c0_i32_1 = arith.constant 0 : i32
    return %arg0, %arg1, %c0_i32, %c0_i32_0 : i32, i32, i32, i32
  }
  func.func @transform_2(%arg0: i32, %arg1: i32) -> (i32, i32) {
    %c0_i32 = arith.constant 0 : i32
    %c0_i32_0 = arith.constant 0 : i32
    %c0_i32_1 = arith.constant 0 : i32
    return %c0_i32, %c0_i32_0 : i32, i32
  }
  func.func @transform_3(%arg0: i32, %arg1: i32) -> (i32, i32) {
    %c0_i32 = arith.constant 0 : i32
    %c0_i32_0 = arith.constant 0 : i32
    %c0_i32_1 = arith.constant 0 : i32
    return %c0_i32, %c0_i32_0 : i32, i32
  }
  func.func @transform_4(%arg0: i32, %arg1: i32) -> (i32, i32) {
    %c0_i32 = arith.constant 0 : i32
    %c0_i32_0 = arith.constant 0 : i32
    %c0_i32_1 = arith.constant 0 : i32
    return %c0_i32, %c0_i32_0 : i32, i32
  }
  func.func @transform_5(%arg0: i32, %arg1: i32) -> (i32, i32) {
    %c0_i32 = arith.constant 0 : i32
    %c0_i32_0 = arith.constant 0 : i32
    %c0_i32_1 = arith.constant 0 : i32
    return %c0_i32, %c0_i32_0 : i32, i32
  }
  func.func @transform_6(%arg0: i32, %arg1: i32) -> (i32, i32) {
    %c0_i32 = arith.constant 0 : i32
    %c0_i32_0 = arith.constant 0 : i32
    %c0_i32_1 = arith.constant 0 : i32
    return %c0_i32, %c0_i32_0 : i32, i32
  }
  func.func @transform_7(%arg0: i32, %arg1: i32) -> (i32, i32, i32, i32) {
    %c0_i32 = arith.constant 0 : i32
    %c0_i32_0 = arith.constant 0 : i32
    %c0_i32_1 = arith.constant 0 : i32
    return %arg0, %arg1, %c0_i32, %c0_i32_0 : i32, i32, i32, i32
  }
}

</mosaic_0001>

<llo_original>
// kernel: tpu_custom_call.1
$region0: #{tpu_custom_call.1}
  #allocation0 [shape = 'u32[]', space=smem, size = 0x4, offset = 0x4, fixed_abs, tag = 'smem constant byte address 0x4 - core index']
  #allocation1 [shape = 'u32[144,128]{1,0:T(1,128)}', space=vmem, size = 0x12000, scoped, tag = 'internal scratch']
  %s0 = inlined_call_operand.hbm [shape: bf16[2,8,8,8], index: 0, kind: input, shape index: {}]
  %s1 = inlined_call_operand.hbm [shape: bf16[2,4,4,16], index: 1, kind: input, shape index: {}]
  %s2 = inlined_call_operand.vmem [shape: bf16[8,16], index: 2, kind: input, shape index: {}]
  %s3 = inlined_call_operand.vmem [shape: bf16[8,2], index: 3, kind: input, shape index: {}]
  %s4 = inlined_call_operand.vmem [shape: f32[1,16], index: 4, kind: input, shape index: {}]
  %s5 = inlined_call_operand.vmem [shape: f32[1,2], index: 5, kind: input, shape index: {}]
  %s6 = inlined_call_operand.vmem [shape: f32[2,16], index: 6, kind: input, shape index: {}]
  %s7 = inlined_call_operand.hbm [shape: bf16[2,8,8,16], index: 7, kind: output, shape index: {}]
  %s8 = sld [smem:[#allocation0]]
  $region69: #{tpu_custom_call.1} parent=0
    _
  %s10 = ssub.s32 1, %s8
  %s11 = scalar_select 0, %s10, %s8
  $region1: #{tpu_custom_call.1} parent=0
    #allocation2 [shape = 'u8[16384]{0}', space=vmem, size = 0x4000, scoped, tag = 'input window, operand 0']
    #allocation3 [shape = 's32[2]{0}', space=sflag, size = 0x8, scoped, tag = 'scoped memory for tpu_custom_call.1']
    #allocation4 [shape = 's32[2]{0}', space=sflag, size = 0x8, scoped, tag = 'scoped memory for tpu_custom_call.1']
    #allocation5 [shape = 'u8[4096]{0}', space=vmem, size = 0x1000, scoped, tag = 'input window, operand 1']
    #allocation6 [shape = 's32[2]{0}', space=sflag, size = 0x8, scoped, tag = 'scoped memory for tpu_custom_call.1']
    #allocation7 [shape = 'u8[16384]{0}', space=vmem, size = 0x4000, scoped, tag = 'output window, operand 0']
    %12 = vsyncpa [#allocation3], 0
    %s13 = scalar_lea.sflag [#allocation3], 1
    %14 = vsyncpa %s13, 0
    %15 = vsyncpa [#allocation6], 0
    %s16 = scalar_lea.sflag [#allocation6], 1
    %17 = vsyncpa %s16, 0
    %18 = vsyncpa [#allocation4], 0
    %s19 = scalar_lea.sflag [#allocation4], 1
    %20 = vsyncpa %s19, 0
    loop: start=0, step=1, limit=6
    $region2: #{tpu_custom_call.1} parent=1 // loop_pre_header
      _
    $region3: #{tpu_custom_call.1} parent=1 // loop_header
      %s22 = sphi 0, %s26
      %p23 = scmp.ge.s32.totalorder %s22, 6
      %s29 = sphi 0, %s41
      %s30 = sphi 0, %s37
      %s31 = sphi 0, %s29
      %s32 = sphi 0, %s30
      %s33 = sphi 0, %s31
      %s34 = sphi 0, %s32
      %s46 = sphi 0, %s48
      %s49 = sphi 0, %s46
      %s50 = sphi 0, %s49
      %s66 = sphi 0, %s50
      %s74 = sphi 0, %s76
      %s77 = sphi 0, %s74
      %s78 = sphi 0, %s77
      %s94 = sphi 0, %s78
      %s98 = sphi 0, %s98
      %s100 = sphi 0, %s98
      %s101 = sphi 0, %s100
      %s115 = sphi 0, %s101
      %s119 = sphi 0, %s119
      %s121 = sphi 0, %s119
      %s122 = sphi 0, %s121
      %s136 = sphi 0, %s122
      %s140 = sphi 0, %s140
      %s142 = sphi 0, %s140
      %s143 = sphi 0, %s142
      %s157 = sphi 0, %s143
      %s161 = sphi 0, %s161
      %s163 = sphi 0, %s161
      %s164 = sphi 0, %s163
      %s178 = sphi 0, %s164
      %s182 = sphi 0, %s182
      %s184 = sphi 0, %s182
      %s185 = sphi 0, %s184
      %s199 = sphi 0, %s185
      %s207 = sphi 0, %s209
      %s210 = sphi 0, %s207
      %s211 = sphi 0, %s210
      %s227 = sphi 0, %s211
    $region4: #{tpu_custom_call.1} parent=1 // loop_header_branch
      %25 = sbr.rel (%p23) target = $region8
    $region5: #{tpu_custom_call.1} parent=1 // loop_body
      %s27 = ssub.s32 %s22, 1
      %s28 = ssub.s32 %s22, 2
      %s35 = sadd.s32 1, %s30
      %p36 = scmp.ge.s32.totalorder %s35, 2
      %s37 = scalar_select %p36, 0, %s35
      %s38 = sadd.s32 1, %s29
      %s39 = scalar_select %p36, %s38, %s29
      %p40 = scmp.ge.s32.totalorder %s39, 2
      %s41 = scalar_select %p40, 0, %s39
      %s42 = ssub.s32 %s29, %s41
      %s43 = ssub.s32 %s30, %s37
      %s44 = sor.u32 %s42, %s43
      %p45 = scmp.eq.s32.totalorder %s44, 0
      %s47 = sadd.s32 %s46, 1
      %s48 = scalar_select %p45, %s46, %s47
      %p51 = pneg %p45
      %p52 = scmp.eq.s32.totalorder %s22, 3
      %p53 = por %p51, %p52
      %p54 = scmp.ne.s32.totalorder %s46, %s49
      %p55 = scmp.eq.s32.totalorder %s22, 0
      %p56 = por %p54, %p55
      %p57 = scmp.ne.s32.totalorder %s46, %s49
      %p58 = scmp.eq.s32.totalorder %s27, 3
      %p59 = por %p57, %p58
      %p60 = scmp.ne.s32.totalorder %s49, %s50
      %p61 = scmp.eq.s32.totalorder %s27, 0
      %p62 = por %p60, %p61
      %p63 = scmp.ne.s32.totalorder %s49, %s50
      %p64 = scmp.eq.s32.totalorder %s28, 3
      %p65 = por %p63, %p64
      %p67 = scmp.ne.s32.totalorder %s50, %s66
      %p68 = scmp.eq.s32.totalorder %s28, 0
      %p69 = por %p67, %p68
      %s70 = ssub.s32 %s29, %s41
      %s71 = ssub.s32 %s30, %s37
      %s72 = sor.u32 %s70, %s71
      %p73 = scmp.eq.s32.totalorder %s72, 0
      %s75 = sadd.s32 %s74, 1
      %s76 = scalar_select %p73, %s74, %s75
      %p79 = pneg %p73
      %p80 = scmp.eq.s32.totalorder %s22, 3
      %p81 = por %p79, %p80
      %p82 = scmp.ne.s32.totalorder %s74, %s77
      %p83 = scmp.eq.s32.totalorder %s22, 0
      %p84 = por %p82, %p83
      %p85 = scmp.ne.s32.totalorder %s74, %s77
      %p86 = scmp.eq.s32.totalorder %s27, 3
      %p87 = por %p85, %p86
      %p88 = scmp.ne.s32.totalorder %s77, %s78
      %p89 = scmp.eq.s32.totalorder %s27, 0
      %p90 = por %p88, %p89
      %p91 = scmp.ne.s32.totalorder %s77, %s78
      %p92 = scmp.eq.s32.totalorder %s28, 3
      %p93 = por %p91, %p92
      %p95 = scmp.ne.s32.totalorder %s78, %s94
      %p96 = scmp.eq.s32.totalorder %s28, 0
      %p97 = por %p95, %p96
      %s99 = sadd.s32 %s98, 1
      %p102 = scmp.eq.s32.totalorder %s22, 3
      %p103 = scmp.ne.s32.totalorder %s98, %s100
      %p104 = scmp.eq.s32.totalorder %s22, 0
      %p105 = por %p103, %p104
      %p106 = scmp.ne.s32.totalorder %s98, %s100
      %p107 = scmp.eq.s32.totalorder %s27, 3
      %p108 = por %p106, %p107
      %p109 = scmp.ne.s32.totalorder %s100, %s101
      %p110 = scmp.eq.s32.totalorder %s27, 0
      %p111 = por %p109, %p110
      %p112 = scmp.ne.s32.totalorder %s100, %s101
      %p113 = scmp.eq.s32.totalorder %s28, 3
      %p114 = por %p112, %p113
      %p116 = scmp.ne.s32.totalorder %s101, %s115
      %p117 = scmp.eq.s32.totalorder %s28, 0
      %p118 = por %p116, %p117
      %s120 = sadd.s32 %s119, 1
      %p123 = scmp.eq.s32.totalorder %s22, 3
      %p124 = scmp.ne.s32.totalorder %s119, %s121
      %p125 = scmp.eq.s32.totalorder %s22, 0
      %p126 = por %p124, %p125
      %p127 = scmp.ne.s32.totalorder %s119, %s121
      %p128 = scmp.eq.s32.totalorder %s27, 3
      %p129 = por %p127, %p128
      %p130 = scmp.ne.s32.totalorder %s121, %s122
      %p131 = scmp.eq.s32.totalorder %s27, 0
      %p132 = por %p130, %p131
      %p133 = scmp.ne.s32.totalorder %s121, %s122
      %p134 = scmp.eq.s32.totalorder %s28, 3
      %p135 = por %p133, %p134
      %p137 = scmp.ne.s32.totalorder %s122, %s136
      %p138 = scmp.eq.s32.totalorder %s28, 0
      %p139 = por %p137, %p138
      %s141 = sadd.s32 %s140, 1
      %p144 = scmp.eq.s32.totalorder %s22, 3
      %p145 = scmp.ne.s32.totalorder %s140, %s142
      %p146 = scmp.eq.s32.totalorder %s22, 0
      %p147 = por %p145, %p146
      %p148 = scmp.ne.s32.totalorder %s140, %s142
      %p149 = scmp.eq.s32.totalorder %s27, 3
      %p150 = por %p148, %p149
      %p151 = scmp.ne.s32.totalorder %s142, %s143
      %p152 = scmp.eq.s32.totalorder %s27, 0
      %p153 = por %p151, %p152
      %p154 = scmp.ne.s32.totalorder %s142, %s143
      %p155 = scmp.eq.s32.totalorder %s28, 3
      %p156 = por %p154, %p155
      %p158 = scmp.ne.s32.totalorder %s143, %s157
      %p159 = scmp.eq.s32.totalorder %s28, 0
      %p160 = por %p158, %p159
      %s162 = sadd.s32 %s161, 1
      %p165 = scmp.eq.s32.totalorder %s22, 3
      %p166 = scmp.ne.s32.totalorder %s161, %s163
      %p167 = scmp.eq.s32.totalorder %s22, 0
      %p168 = por %p166, %p167
      %p169 = scmp.ne.s32.totalorder %s161, %s163
      %p170 = scmp.eq.s32.totalorder %s27, 3
      %p171 = por %p169, %p170
      %p172 = scmp.ne.s32.totalorder %s163, %s164
      %p173 = scmp.eq.s32.totalorder %s27, 0
      %p174 = por %p172, %p173
      %p175 = scmp.ne.s32.totalorder %s163, %s164
      %p176 = scmp.eq.s32.totalorder %s28, 3
      %p177 = por %p175, %p176
      %p179 = scmp.ne.s32.totalorder %s164, %s178
      %p180 = scmp.eq.s32.totalorder %s28, 0
      %p181 = por %p179, %p180
      %s183 = sadd.s32 %s182, 1
      %p186 = scmp.eq.s32.totalorder %s22, 3
      %p187 = scmp.ne.s32.totalorder %s182, %s184
      %p188 = scmp.eq.s32.totalorder %s22, 0
      %p189 = por %p187, %p188
      %p190 = scmp.ne.s32.totalorder %s182, %s184
      %p191 = scmp.eq.s32.totalorder %s27, 3
      %p192 = por %p190, %p191
      %p193 = scmp.ne.s32.totalorder %s184, %s185
      %p194 = scmp.eq.s32.totalorder %s27, 0
      %p195 = por %p193, %p194
      %p196 = scmp.ne.s32.totalorder %s184, %s185
      %p197 = scmp.eq.s32.totalorder %s28, 3
      %p198 = por %p196, %p197
      %p200 = scmp.ne.s32.totalorder %s185, %s199
      %p201 = scmp.eq.s32.totalorder %s28, 0
      %p202 = por %p200, %p201
      %s203 = ssub.s32 %s29, %s41
      %s204 = ssub.s32 %s30, %s37
      %s205 = sor.u32 %s203, %s204
      %p206 = scmp.eq.s32.totalorder %s205, 0
      %s208 = sadd.s32 %s207, 1
      %s209 = scalar_select %p206, %s207, %s208
      %p212 = pneg %p206
      %p213 = scmp.eq.s32.totalorder %s22, 3
      %p214 = por %p212, %p213
      %p215 = scmp.ne.s32.totalorder %s207, %s210
      %p216 = scmp.eq.s32.totalorder %s22, 0
      %p217 = por %p215, %p216
      %p218 = scmp.ne.s32.totalorder %s207, %s210
      %p219 = scmp.eq.s32.totalorder %s27, 3
      %p220 = por %p218, %p219
      %p221 = scmp.ne.s32.totalorder %s210, %s211
      %p222 = scmp.eq.s32.totalorder %s27, 0
      %p223 = por %p221, %p222
      %p224 = scmp.ne.s32.totalorder %s210, %s211
      %p225 = scmp.eq.s32.totalorder %s28, 3
      %p226 = por %p224, %p225
      %p228 = scmp.ne.s32.totalorder %s211, %s227
      %p229 = scmp.eq.s32.totalorder %s28, 0
      %p230 = por %p228, %p229
      %p231 = scmp.le.s32.totalorder 1, %s22
      %p232 = scmp.lt.s32.totalorder %s22, 5
      %p233 = pnand %p231, %p232
      %p234 = pneg %p233
      // Predicated region
      $region9: #{tpu_custom_call.1} parent=5 // pred_check
        _
      $region10: #{tpu_custom_call.1} parent=5 // pred_check_branch
        %236 = sbr.rel (%p233) target = $region12
      $region11: #{tpu_custom_call.1} parent=5 // pred_region
        %s237 = ssub.s32 %s22, 1
        // Predicated region
        $region13: #{tpu_custom_call.1} parent=11 // pred_check
          %p238 = pneg %p111
        $region14: #{tpu_custom_call.1} parent=11 // pred_check_branch
          %240 = sbr.rel (%p238) target = $region16
        $region15: #{tpu_custom_call.1} parent=11 // pred_region
          _
        $region16: #{tpu_custom_call.1} parent=11 // pred_fallthru
          _
        // Predicated region
        $region17: #{tpu_custom_call.1} parent=11 // pred_check
          %p241 = pneg %p132
        $region18: #{tpu_custom_call.1} parent=11 // pred_check_branch
          %243 = sbr.rel (%p241) target = $region20
        $region19: #{tpu_custom_call.1} parent=11 // pred_region
          _
        $region20: #{tpu_custom_call.1} parent=11 // pred_fallthru
          _
        // Predicated region
        $region21: #{tpu_custom_call.1} parent=11 // pred_check
          %p244 = pneg %p153
        $region22: #{tpu_custom_call.1} parent=11 // pred_check_branch
          %246 = sbr.rel (%p244) target = $region24
        $region23: #{tpu_custom_call.1} parent=11 // pred_region
          _
        $region24: #{tpu_custom_call.1} parent=11 // pred_fallthru
          _
        // Predicated region
        $region25: #{tpu_custom_call.1} parent=11 // pred_check
          %p247 = pneg %p174
        $region26: #{tpu_custom_call.1} parent=11 // pred_check_branch
          %249 = sbr.rel (%p247) target = $region28
        $region27: #{tpu_custom_call.1} parent=11 // pred_region
          _
        $region28: #{tpu_custom_call.1} parent=11 // pred_fallthru
          _
        // Predicated region
        $region29: #{tpu_custom_call.1} parent=11 // pred_check
          %p250 = pneg %p195
        $region30: #{tpu_custom_call.1} parent=11 // pred_check_branch
          %252 = sbr.rel (%p250) target = $region32
        $region31: #{tpu_custom_call.1} parent=11 // pred_region
          _
        $region32: #{tpu_custom_call.1} parent=11 // pred_fallthru
          _
      $region12: #{tpu_custom_call.1} parent=5 // pred_fallthru
        _
      %p253 = scmp.lt.s32.totalorder %s22, 4
      // Predicated region
      $region33: #{tpu_custom_call.1} parent=5 // pred_check
        %p254 = pneg %p253
      $region34: #{tpu_custom_call.1} parent=5 // pred_check_branch
        %256 = sbr.rel (%p254) target = $region36
      $region35: #{tpu_custom_call.1} parent=5 // pred_region
        // Predicated region
        $region37: #{tpu_custom_call.1} parent=35 // pred_check
          %p257 = pneg %p56
        $region38: #{tpu_custom_call.1} parent=35 // pred_check_branch
          %259 = sbr.rel (%p257) target = $region40
        $region39: #{tpu_custom_call.1} parent=35 // pred_region
          %s260 = sand.u32 %s46, 1
          %s261 = scalar_lea.sflag [#allocation3], %s260
          %s262 = sand.u32 %s46, 1
          %s263 = smul.addr %s262, 16
          %s264 = scalar_lea.vmem [#allocation2], %s263
          %s265 = smul.u32 4, %s30
          %s267 = ssub.s32 256, 256
          %268 = vsyncadd %s261, %s267
          %s269 = smul.addr %s29, 8
          %s270 = sadd.s32 %s265, %s269
          %s271 = smul.addr %s270, 64
          %s272 = scalar_lea.hbm %s0, %s271
          %s273 = sshll.u32 %s264, 4
          %s274 = int_to_ptr.vmem [resolvable:$true] %s273
          %279 = dma.hbm_to_vmem [thread:$0]  %s272, 256, %s274, %s261, 64, 64, 4
        $region40: #{tpu_custom_call.1} parent=35 // pred_fallthru
          _
        // Predicated region
        $region41: #{tpu_custom_call.1} parent=35 // pred_check
          %p280 = pneg %p84
        $region42: #{tpu_custom_call.1} parent=35 // pred_check_branch
          %282 = sbr.rel (%p280) target = $region44
        $region43: #{tpu_custom_call.1} parent=35 // pred_region
          %s283 = sand.u32 %s74, 1
          %s284 = scalar_lea.sflag [#allocation6], %s283
          %s285 = sand.u32 %s74, 1
          %s286 = smul.addr %s285, 4
          %s287 = scalar_lea.vmem [#allocation5], %s286
          %s288 = smul.u32 2, %s30
          %s290 = ssub.s32 64, 64
          %291 = vsyncadd %s284, %s290
          %s292 = smul.addr %s29, 4
          %s293 = sadd.s32 %s288, %s292
          %s294 = smul.addr %s293, 32
          %s295 = scalar_lea.hbm %s1, %s294
          %s296 = sshll.u32 %s287, 4
          %s297 = int_to_ptr.vmem [resolvable:$true] %s296
          %302 = dma.hbm_to_vmem [thread:$0]  %s295, 64, %s297, %s284, 32, 32, 2
        $region44: #{tpu_custom_call.1} parent=35 // pred_fallthru
          _
      $region36: #{tpu_custom_call.1} parent=5 // pred_fallthru
        _
      %p303 = scmp.le.s32.totalorder 1, %s22
      %p304 = scmp.lt.s32.totalorder %s22, 5
      %p305 = pnand %p303, %p304
      %p306 = pneg %p305
      // Predicated region
      $region45: #{tpu_custom_call.1} parent=5 // pred_check
        _
      $region46: #{tpu_custom_call.1} parent=5 // pred_check_branch
        %308 = sbr.rel (%p305) target = $region48
      $region47: #{tpu_custom_call.1} parent=5 // pred_region
        %s309 = ssub.s32 %s22, 1
        %s310 = sand.u32 %s49, 1
        %s311 = scalar_lea.sflag [#allocation3], %s310
        %s312 = sand.u32 %s49, 1
        %s313 = smul.addr %s312, 16
        %s314 = scalar_lea.vmem [#allocation2], %s313
        // Predicated region
        $region49: #{tpu_custom_call.1} parent=47 // pred_check
          %p315 = pneg %p62
        $region50: #{tpu_custom_call.1} parent=47 // pred_check_branch
          %317 = sbr.rel (%p315) target = $region52
        $region51: #{tpu_custom_call.1} parent=47 // pred_region
          %318 = dma.done %s311, 256
        $region52: #{tpu_custom_call.1} parent=47 // pred_fallthru
          _
        %s319 = sand.u32 %s77, 1
        %s320 = scalar_lea.sflag [#allocation6], %s319
        %s321 = sand.u32 %s77, 1
        %s322 = smul.addr %s321, 4
        %s323 = scalar_lea.vmem [#allocation5], %s322
        // Predicated region
        $region53: #{tpu_custom_call.1} parent=47 // pred_check
          %p324 = pneg %p90
        $region54: #{tpu_custom_call.1} parent=47 // pred_check_branch
          %326 = sbr.rel (%p324) target = $region56
        $region55: #{tpu_custom_call.1} parent=47 // pred_region
          %327 = dma.done %s320, 64
        $region56: #{tpu_custom_call.1} parent=47 // pred_fallthru
          _
        %s328 = sand.u32 %s49, 1
        %s329 = scalar_lea.sflag [#allocation3], %s328
        %s330 = sand.u32 %s49, 1
        %s331 = smul.addr %s330, 16
        %s332 = scalar_lea.vmem [#allocation2], %s331
        %p333 = pneg %p62
        %p334 = pneg %p59
        %s335 = sand.u32 %s77, 1
        %s336 = scalar_lea.sflag [#allocation6], %s335
        %s337 = sand.u32 %s77, 1
        %s338 = smul.addr %s337, 4
        %s339 = scalar_lea.vmem [#allocation5], %s338
        %p340 = pneg %p90
        %p341 = pneg %p87
        %p342 = pneg %p111
        %p343 = pneg %p108
        %p344 = pneg %p132
        %p345 = pneg %p129
        %p346 = pneg %p153
        %p347 = pneg %p150
        %p348 = pneg %p174
        %p349 = pneg %p171
        %p350 = pneg %p195
        %p351 = pneg %p192
        %p352 = pneg %p223
        %p353 = pneg %p220
        %s354 = sand.u32 %s210, 1
        %s355 = scalar_lea.sflag [#allocation4], %s354
        %s356 = sand.u32 %s210, 1
        %s357 = smul.addr %s356, 16
        %s358 = scalar_lea.vmem [#allocation7], %s357
        %s359 = smul.u32 4, %s32
        %s360 = smul.u32 2, %s32
        %s361 = smul.u32 4, %s32
        %v363 = vld [vmem:[%s314] sm:$0xf]
        %v364 = vld [vmem:[%s314 + $0x4] sm:$0xf]
        %v365 = vld [vmem:[%s314 + $0x8] sm:$0xf]
        %v366 = vld [vmem:[%s314 + $0xc] sm:$0xf]
        %v367 = vld [vmem:[%s323] sm:$0x3]
        %v368 = vld [vmem:[%s323 + $0x2] sm:$0x3]
        %v372 = vunpack.c.l.s4 1966171168
        %v373 = vunpack.c.0.s8 %v372
        %v374 = vlaneseq
        %v375 = vshrl.u32 %v374, 7
        %v376 = vsub.s32 %v373, %v375
        %v377 = vrot.slane %v367, %v376
        %v378 = vcombine.high %v377, %v377
        %v380 = vunpack.c.l.s4 1966171168
        %v381 = vunpack.c.0.s8 %v380
        %v382 = vlaneseq
        %v383 = vshrl.u32 %v382, 7
        %v384 = vsub.s32 %v381, %v383
        %v385 = vrot.slane %v368, %v384
        %v386 = vcombine.high %v385, %v385
        %v387 = vunpack.i.l.s16 %v377
        %v388 = vunpack.i.h.s16 %v377
        %v389 = vunpack.i.l.s16 %v378
        %v390 = vunpack.i.h.s16 %v378
        %v391 = vunpack.i.l.s16 %v385
        %v392 = vunpack.i.h.s16 %v385
        %v393 = vunpack.i.l.s16 %v386
        %v394 = vunpack.i.h.s16 %v386
        %v395 = vpack.i.b16 %v387, %v387
        %v396 = vpack.i.b16 %v388, %v388
        %v397 = vpack.i.b16 %v389, %v389
        %v398 = vpack.i.b16 %v390, %v390
        %v399 = vpack.i.b16 %v391, %v391
        %v400 = vpack.i.b16 %v392, %v392
        %v401 = vpack.i.b16 %v393, %v393
        %v402 = vpack.i.b16 %v394, %v394
        %v403 = vlaneseq
        %v404 = vshrl.u32 %v403, 7
        %v405 = vsub.s32 0, %v404
        %v406 = vrot.slane %v395, %v405
        %v407 = vlaneseq
        %v408 = vshrl.u32 %v407, 7
        %v409 = vsub.s32 0, %v408
        %v410 = vrot.slane %v396, %v409
        %v411 = vlaneseq
        %v412 = vshrl.u32 %v411, 7
        %v413 = vsub.s32 0, %v412
        %v414 = vrot.slane %v397, %v413
        %v415 = vlaneseq
        %v416 = vshrl.u32 %v415, 7
        %v417 = vsub.s32 0, %v416
        %v418 = vrot.slane %v398, %v417
        %v419 = vlaneseq
        %v420 = vshrl.u32 %v419, 7
        %v421 = vsub.s32 0, %v420
        %v422 = vrot.slane %v399, %v421
        %v423 = vlaneseq
        %v424 = vshrl.u32 %v423, 7
        %v425 = vsub.s32 0, %v424
        %v426 = vrot.slane %v400, %v425
        %v427 = vlaneseq
        %v428 = vshrl.u32 %v427, 7
        %v429 = vsub.s32 0, %v428
        %v430 = vrot.slane %v401, %v429
        %v431 = vlaneseq
        %v432 = vshrl.u32 %v431, 7
        %v433 = vsub.s32 0, %v432
        %v434 = vrot.slane %v402, %v433
        %v436 = vpack.i.b16 %v406, %v406
        %v438 = vlaneseq
        %v439 = vshrl.u32 %v438, 7
        %v440 = vsub.s32 0, %v439
        %v441 = vrot.slane %v436, %v440
        %v443 = vpack.i.b16 %v410, %v410
        %v445 = vlaneseq
        %v446 = vshrl.u32 %v445, 7
        %v447 = vsub.s32 0, %v446
        %v448 = vrot.slane %v443, %v447
        %v450 = vpack.i.b16 %v414, %v414
        %v452 = vlaneseq
        %v453 = vshrl.u32 %v452, 7
        %v454 = vsub.s32 0, %v453
        %v455 = vrot.slane %v450, %v454
        %v457 = vpack.i.b16 %v418, %v418
        %v459 = vlaneseq
        %v460 = vshrl.u32 %v459, 7
        %v461 = vsub.s32 0, %v460
        %v462 = vrot.slane %v457, %v461
        %v464 = vpack.i.b16 %v422, %v422
        %v466 = vlaneseq
        %v467 = vshrl.u32 %v466, 7
        %v468 = vsub.s32 0, %v467
        %v469 = vrot.slane %v464, %v468
        %v471 = vpack.i.b16 %v426, %v426
        %v473 = vlaneseq
        %v474 = vshrl.u32 %v473, 7
        %v475 = vsub.s32 0, %v474
        %v476 = vrot.slane %v471, %v475
        %v478 = vpack.i.b16 %v430, %v430
        %v480 = vlaneseq
        %v481 = vshrl.u32 %v480, 7
        %v482 = vsub.s32 0, %v481
        %v483 = vrot.slane %v478, %v482
        %v485 = vpack.i.b16 %v434, %v434
        %v487 = vlaneseq
        %v488 = vshrl.u32 %v487, 7
        %v489 = vsub.s32 0, %v488
        %v490 = vrot.slane %v485, %v489
        %v491 = vunpack.c.l.bf16 %v441
        %v492 = vunpack.c.l.bf16 %v448
        %v493 = vunpack.c.l.bf16 %v455
        %v494 = vunpack.c.l.bf16 %v462
        %v495 = vunpack.c.l.bf16 %v469
        %v496 = vunpack.c.l.bf16 %v476
        %v497 = vunpack.c.l.bf16 %v483
        %v498 = vunpack.c.l.bf16 %v490
        %v499 = vld [vmem:[%s2] sm:$0xf]
        %v500 = vld [vmem:[%s4] sm:$0x1]
        %v502 = vlaneseq
        %v503 = vshrl.u32 %v502, 7
        %v504 = vsub.s32 0, %v503
        %v505 = vrot.slane %v500, %v504
        %v511 = vunpack.c.l.b16 %v363
        %v512 = vunpack.c.l.b16 %v364
        %v513 = vunpack.c.l.b16 %v365
        %v514 = vunpack.c.l.b16 %v366
        %v515 = vpack.c.b16 %v512, %v511
        %v516 = vpack.c.b16 %v514, %v513
        %vm517 = vcmask 64512
        %v519 = vsel %vm517, %v515, 0
        %v522 = vsel %vm517, %v516, 0
        %vm524 = vcmask 1043456
        %v526 = vsel %vm524, %v499, 0
        %528 = vmatprep.subr.bf16.mxu0 0
        %529 = vmatpush1.bf16.msra.mxu0 %v526
        %530 = vmatprep.subr.bf16.mxu0 0
        %531 = vmatpush1.bf16.msra.mxu0 0
        %532 = vmatprep.subr.bf16.mxu0 0
        %533 = vmatpush1.bf16.msra.mxu0 0
        %534 = vmatprep.subr.bf16.mxu0 0
        %535 = vmatpush1.bf16.msra.mxu0 0
        %536 = vmatprep.subr.bf16.mxu0 0
        %537 = vmatpush1.bf16.msra.mxu0 0
        %538 = vmatprep.subr.bf16.mxu0 0
        %539 = vmatpush1.bf16.msra.mxu0 0
        %540 = vmatprep.subr.bf16.mxu0 0
        %541 = vmatpush1.bf16.msra.mxu0 0
        %542 = vmatprep.subr.bf16.mxu0 0
        %543 = vmatpush1.bf16.msra.mxu0 0
        %544 = vmatprep.subr.bf16.mxu0 0
        %545 = vmatpush1.bf16.msra.mxu0 0
        %546 = vmatprep.subr.bf16.mxu0 0
        %547 = vmatpush1.bf16.msra.mxu0 0
        %548 = vmatprep.subr.bf16.mxu0 0
        %549 = vmatpush1.bf16.msra.mxu0 0
        %550 = vmatprep.subr.bf16.mxu0 0
        %551 = vmatpush1.bf16.msra.mxu0 0
        %552 = vmatprep.subr.bf16.mxu0 0
        %553 = vmatpush1.bf16.msra.mxu0 0
        %554 = vmatprep.subr.bf16.mxu0 0
        %555 = vmatpush1.bf16.msra.mxu0 0
        %556 = vmatprep.subr.bf16.mxu0 0
        %557 = vmatpush1.bf16.msra.mxu0 0
        %558 = vmatprep.subr.bf16.mxu0 0
        %559 = vmatpush1.bf16.msra.mxu0 0
        %560 = vmatprep.mubr.bf16.mxu0 0
        %561 = vmatmul.mubr.bf16.gmra.mrb[0].mxu0 %v519
        %v562 = vpop.f32.mrb[0].mxu0
        %v563 = vadd.f32 %v505, %v562
        %v564 = vpop.f32.mrb[0].mxu0
        %v565 = vpop.f32.mrb[0].mxu0
        %v566 = vadd.f32 %v505, %v565
        %v567 = vpop.f32.mrb[0].mxu0
        %568 = vmatprep.mubr.bf16.mxu0 0
        %569 = vmatmul.mubr.bf16.gmra.mrb[0].mxu0 %v522
        %v570 = vpop.f32.mrb[0].mxu0
        %v571 = vadd.f32 %v505, %v570
        %v572 = vpop.f32.mrb[0].mxu0
        %v573 = vpop.f32.mrb[0].mxu0
        %v574 = vadd.f32 %v505, %v573
        %v575 = vpop.f32.mrb[0].mxu0
        %576 = vdwg.mxu0
        %v577 = vld [vmem:[%s3] sm:$0xf]
        %v579 = vsel %vm524, %v577, 0
        %581 = vmatprep.subr.bf16.mxu0 0
        %582 = vmatpush1.bf16.msra.mxu0 %v579
        %583 = vmatprep.subr.bf16.mxu0 0
        %584 = vmatpush1.bf16.msra.mxu0 0
        %585 = vmatprep.subr.bf16.mxu0 0
        %586 = vmatpush1.bf16.msra.mxu0 0
        %587 = vmatprep.subr.bf16.mxu0 0
        %588 = vmatpush1.bf16.msra.mxu0 0
        %589 = vmatprep.subr.bf16.mxu0 0
        %590 = vmatpush1.bf16.msra.mxu0 0
        %591 = vmatprep.subr.bf16.mxu0 0
        %592 = vmatpush1.bf16.msra.mxu0 0
        %593 = vmatprep.subr.bf16.mxu0 0
        %594 = vmatpush1.bf16.msra.mxu0 0
        %595 = vmatprep.subr.bf16.mxu0 0
        %596 = vmatpush1.bf16.msra.mxu0 0
        %597 = vmatprep.subr.bf16.mxu0 0
        %598 = vmatpush1.bf16.msra.mxu0 0
        %599 = vmatprep.subr.bf16.mxu0 0
        %600 = vmatpush1.bf16.msra.mxu0 0
        %601 = vmatprep.subr.bf16.mxu0 0
        %602 = vmatpush1.bf16.msra.mxu0 0
        %603 = vmatprep.subr.bf16.mxu0 0
        %604 = vmatpush1.bf16.msra.mxu0 0
        %605 = vmatprep.subr.bf16.mxu0 0
        %606 = vmatpush1.bf16.msra.mxu0 0
        %607 = vmatprep.subr.bf16.mxu0 0
        %608 = vmatpush1.bf16.msra.mxu0 0
        %609 = vmatprep.subr.bf16.mxu0 0
        %610 = vmatpush1.bf16.msra.mxu0 0
        %611 = vmatprep.subr.bf16.mxu0 0
        %612 = vmatpush1.bf16.msra.mxu0 0
        %613 = vmatprep.mubr.bf16.mxu0 0
        %614 = vmatmul.mubr.bf16.gmra.mrb[0].mxu0 %v519
        %v615 = vpop.f32.mrb[0].mxu0
        %v616 = vadd.f32 0.0, %v615
        %v617 = vpop.f32.mrb[0].mxu0
        %v618 = vpop.f32.mrb[0].mxu0
        %v619 = vadd.f32 0.0, %v618
        %v620 = vpop.f32.mrb[0].mxu0
        %621 = vmatprep.mubr.bf16.mxu0 0
        %622 = vmatmul.mubr.bf16.gmra.mrb[0].mxu0 %v522
        %v623 = vpop.f32.mrb[0].mxu0
        %v624 = vadd.f32 0.0, %v623
        %v625 = vpop.f32.mrb[0].mxu0
        %v626 = vpop.f32.mrb[0].mxu0
        %v627 = vadd.f32 0.0, %v626
        %v628 = vpop.f32.mrb[0].mxu0
        %629 = vdwg.mxu0
        %v630 = vld [vmem:[%s5] sm:$0x1]
        %v632 = vlaneseq
        %v633 = vshrl.u32 %v632, 7
        %v634 = vsub.s32 0, %v633
        %v635 = vrot.slane %v630, %v634
        %v637 = vadd.f32 %v616, %v635
        %v638 = vadd.f32 %v619, %v635
        %v639 = vadd.f32 %v624, %v635
        %v640 = vadd.f32 %v627, %v635
        %v641 = vld [vmem:[%s6] sm:$0x1]
        %v642 = vlaneseq
        %v643 = vshrl.u32 %v642, 7
        %v644 = vsub.s32 0, %v643
        %v645 = vrot.slane %v641, %v644
        %v647 = vcombine.high %v645, %v645
        %v649 = vunpack.c.l.s4 1983009808
        %v650 = vunpack.c.0.s8 %v649
        %v651 = vlaneseq
        %v652 = vshrl.u32 %v651, 7
        %v653 = vsub.s32 %v650, %v652
        %v654 = vrot.slane %v645, %v653
        %v656 = vunpack.c.l.s4 1983009808
        %v657 = vunpack.c.0.s8 %v656
        %v658 = vlaneseq
        %v659 = vshrl.u32 %v658, 7
        %v660 = vsub.s32 %v657, %v659
        %v661 = vrot.slane %v647, %v660
        %v662 = vcombine.high %v654, %v654
        %v663 = vcombine.high %v661, %v661
        %v668 = vmul.f32 %v491, %v654
        %v669 = vmul.f32 %v492, %v662
        %v670 = vmul.f32 %v493, %v661
        %v671 = vmul.f32 %v494, %v663
        %v672 = vmul.f32 %v495, %v654
        %v673 = vmul.f32 %v496, %v662
        %v674 = vmul.f32 %v497, %v661
        %v675 = vmul.f32 %v498, %v663
        %v684 = vcombine.low %v668, %v669
        %v685 = vcombine.low %v670, %v671
        %v687 = vunpack.c.l.s4 1983009808
        %v688 = vunpack.c.0.s8 %v687
        %v689 = vlaneseq
        %v690 = vshrl.u32 %v689, 7
        %v691 = vsub.s32 %v688, %v690
        %v692 = vrot.slane %v684, %v691
        %v694 = vunpack.c.l.s4 1983009808
        %v695 = vunpack.c.0.s8 %v694
        %v696 = vlaneseq
        %v697 = vshrl.u32 %v696, 7
        %v698 = vsub.s32 %v695, %v697
        %v699 = vrot.slane %v685, %v698
        %v700 = vcombine.low %v692, %v699
        %v701 = vcombine.low %v672, %v673
        %v702 = vcombine.low %v674, %v675
        %v704 = vunpack.c.l.s4 1983009808
        %v705 = vunpack.c.0.s8 %v704
        %v706 = vlaneseq
        %v707 = vshrl.u32 %v706, 7
        %v708 = vsub.s32 %v705, %v707
        %v709 = vrot.slane %v701, %v708
        %v711 = vunpack.c.l.s4 1983009808
        %v712 = vunpack.c.0.s8 %v711
        %v713 = vlaneseq
        %v714 = vshrl.u32 %v713, 7
        %v715 = vsub.s32 %v712, %v714
        %v716 = vrot.slane %v702, %v715
        %v717 = vcombine.low %v709, %v716
        %vm720 = vcmask 130048
        %v721 = vsel %vm720, %v700, 0.0
        %722 = vadd.xlane.f32.xlu0 %v721
        %v723 = vpop.xlane.xlu0 %722
        %v724 = vsel %vm720, %v717, 0.0
        %725 = vadd.xlane.f32.xlu0 %v724
        %v726 = vpop.xlane.xlu0 %725
        %v727 = vadd.f32 %v637, %v723
        %v728 = vadd.f32 %v638, %v723
        %v729 = vadd.f32 %v639, %v726
        %v730 = vadd.f32 %v640, %v726
        %v731 = vld [vmem:[%s6 + $0x1] sm:$0x1]
        %v732 = vlaneseq
        %v733 = vshrl.u32 %v732, 7
        %v734 = vsub.s32 0, %v733
        %v735 = vrot.slane %v731, %v734
        %v737 = vcombine.high %v735, %v735
        %v739 = vunpack.c.l.s4 1983009808
        %v740 = vunpack.c.0.s8 %v739
        %v741 = vlaneseq
        %v742 = vshrl.u32 %v741, 7
        %v743 = vsub.s32 %v740, %v742
        %v744 = vrot.slane %v735, %v743
        %v746 = vunpack.c.l.s4 1983009808
        %v747 = vunpack.c.0.s8 %v746
        %v748 = vlaneseq
        %v749 = vshrl.u32 %v748, 7
        %v750 = vsub.s32 %v747, %v749
        %v751 = vrot.slane %v737, %v750
        %v752 = vcombine.high %v744, %v744
        %v753 = vcombine.high %v751, %v751
        %v758 = vmul.f32 %v491, %v744
        %v759 = vmul.f32 %v492, %v752
        %v760 = vmul.f32 %v493, %v751
        %v761 = vmul.f32 %v494, %v753
        %v762 = vmul.f32 %v495, %v744
        %v763 = vmul.f32 %v496, %v752
        %v764 = vmul.f32 %v497, %v751
        %v765 = vmul.f32 %v498, %v753
        %v774 = vcombine.low %v758, %v759
        %v775 = vcombine.low %v760, %v761
        %v777 = vunpack.c.l.s4 1983009808
        %v778 = vunpack.c.0.s8 %v777
        %v779 = vlaneseq
        %v780 = vshrl.u32 %v779, 7
        %v781 = vsub.s32 %v778, %v780
        %v782 = vrot.slane %v774, %v781
        %v784 = vunpack.c.l.s4 1983009808
        %v785 = vunpack.c.0.s8 %v784
        %v786 = vlaneseq
        %v787 = vshrl.u32 %v786, 7
        %v788 = vsub.s32 %v785, %v787
        %v789 = vrot.slane %v775, %v788
        %v790 = vcombine.low %v782, %v789
        %v791 = vcombine.low %v762, %v763
        %v792 = vcombine.low %v764, %v765
        %v794 = vunpack.c.l.s4 1983009808
        %v795 = vunpack.c.0.s8 %v794
        %v796 = vlaneseq
        %v797 = vshrl.u32 %v796, 7
        %v798 = vsub.s32 %v795, %v797
        %v799 = vrot.slane %v791, %v798
        %v801 = vunpack.c.l.s4 1983009808
        %v802 = vunpack.c.0.s8 %v801
        %v803 = vlaneseq
        %v804 = vshrl.u32 %v803, 7
        %v805 = vsub.s32 %v802, %v804
        %v806 = vrot.slane %v792, %v805
        %v807 = vcombine.low %v799, %v806
        %v810 = vsel %vm720, %v790, 0.0
        %811 = vadd.xlane.f32.xlu0 %v810
        %v812 = vpop.xlane.xlu0 %811
        %v813 = vsel %vm720, %v807, 0.0
        %814 = vadd.xlane.f32.xlu0 %v813
        %v815 = vpop.xlane.xlu0 %814
        %v816 = vadd.f32 %v637, %v812
        %v817 = vadd.f32 %v638, %v812
        %v818 = vadd.f32 %v639, %v815
        %v819 = vadd.f32 %v640, %v815
        %v820 = vxor.u32 %v727, 2147483648
        %v821 = vxor.u32 %v728, 2147483648
        %v822 = vxor.u32 %v729, 2147483648
        %v823 = vxor.u32 %v730, 2147483648
        %v824 = vmul.f32 %v820, 1.442695
        %v825 = vpow.pop %v824
        %v826 = vmul.f32 %v821, 1.442695
        %v827 = vpow.pop %v826
        %v828 = vmul.f32 %v822, 1.442695
        %v829 = vpow.pop %v828
        %v830 = vmul.f32 %v823, 1.442695
        %v831 = vpow.pop %v830
        %v832 = vadd.f32 %v825, 1.0
        %v833 = vadd.f32 %v827, 1.0
        %v834 = vadd.f32 %v829, 1.0
        %v835 = vadd.f32 %v831, 1.0
        %v836 = vrcp.pop %v832
        %v837 = vmul.f32 1.0, %v836
        %v838 = vrcp.pop %v833
        %v839 = vmul.f32 1.0, %v838
        %v840 = vrcp.pop %v834
        %v841 = vmul.f32 1.0, %v840
        %v842 = vrcp.pop %v835
        %v843 = vmul.f32 1.0, %v842
        %v844 = vxor.u32 %v816, 2147483648
        %v845 = vxor.u32 %v817, 2147483648
        %v846 = vxor.u32 %v818, 2147483648
        %v847 = vxor.u32 %v819, 2147483648
        %v848 = vmul.f32 %v844, 1.442695
        %v849 = vpow.pop %v848
        %v850 = vmul.f32 %v845, 1.442695
        %v851 = vpow.pop %v850
        %v852 = vmul.f32 %v846, 1.442695
        %v853 = vpow.pop %v852
        %v854 = vmul.f32 %v847, 1.442695
        %v855 = vpow.pop %v854
        %v856 = vadd.f32 %v849, 1.0
        %v857 = vadd.f32 %v851, 1.0
        %v858 = vadd.f32 %v853, 1.0
        %v859 = vadd.f32 %v855, 1.0
        %v860 = vrcp.pop %v856
        %v861 = vmul.f32 1.0, %v860
        %v862 = vrcp.pop %v857
        %v863 = vmul.f32 1.0, %v862
        %v864 = vrcp.pop %v858
        %v865 = vmul.f32 1.0, %v864
        %v866 = vrcp.pop %v859
        %v867 = vmul.f32 1.0, %v866
        %869 = vset.pattern.permute.xlu0 0
        %870 = vperm.xlu0 %869, %v837
        %v871 = vpop.permute.xlu0 %870
        %874 = vset.pattern.permute.xlu0 0
        %875 = vperm.xlu0 %874, %v839
        %v876 = vpop.permute.xlu0 %875
        %879 = vset.pattern.permute.xlu0 0
        %880 = vperm.xlu0 %879, %v841
        %v881 = vpop.permute.xlu0 %880
        %884 = vset.pattern.permute.xlu0 0
        %885 = vperm.xlu0 %884, %v843
        %v886 = vpop.permute.xlu0 %885
        %v888 = vmul.f32 %v563, %v871
        %v889 = vmul.f32 %v566, %v876
        %v890 = vmul.f32 %v571, %v881
        %v891 = vmul.f32 %v574, %v886
        %893 = vset.pattern.permute.xlu0 1
        %894 = vperm.xlu0 %893, %v861
        %v895 = vpop.permute.xlu0 %894
        %897 = vset.pattern.permute.xlu0 1
        %898 = vperm.xlu0 %897, %v863
        %v899 = vpop.permute.xlu0 %898
        %901 = vset.pattern.permute.xlu0 1
        %902 = vperm.xlu0 %901, %v865
        %v903 = vpop.permute.xlu0 %902
        %905 = vset.pattern.permute.xlu0 1
        %906 = vperm.xlu0 %905, %v867
        %v907 = vpop.permute.xlu0 %906
        %v909 = vunpack.c.l.s4 269488144
        %v910 = vunpack.c.0.s8 %v909
        %v911 = vlaneseq
        %v912 = vshrl.u32 %v911, 7
        %v913 = vsub.s32 %v910, %v912
        %v914 = vrot.slane %v895, %v913
        %v916 = vunpack.c.l.s4 842150450
        %v917 = vunpack.c.0.s8 %v916
        %v918 = vlaneseq
        %v919 = vshrl.u32 %v918, 7
        %v920 = vsub.s32 %v917, %v919
        %v921 = vrot.slane %v895, %v920
        %v923 = vunpack.c.l.s4 1414812756
        %v924 = vunpack.c.0.s8 %v923
        %v925 = vlaneseq
        %v926 = vshrl.u32 %v925, 7
        %v927 = vsub.s32 %v924, %v926
        %v928 = vrot.slane %v895, %v927
        %v930 = vunpack.c.l.s4 1987475062
        %v931 = vunpack.c.0.s8 %v930
        %v932 = vlaneseq
        %v933 = vshrl.u32 %v932, 7
        %v934 = vsub.s32 %v931, %v933
        %v935 = vrot.slane %v895, %v934
        %v937 = vunpack.c.l.s4 269488144
        %v938 = vunpack.c.0.s8 %v937
        %v939 = vlaneseq
        %v940 = vshrl.u32 %v939, 7
        %v941 = vsub.s32 %v938, %v940
        %v942 = vrot.slane %v899, %v941
        %v944 = vunpack.c.l.s4 842150450
        %v945 = vunpack.c.0.s8 %v944
        %v946 = vlaneseq
        %v947 = vshrl.u32 %v946, 7
        %v948 = vsub.s32 %v945, %v947
        %v949 = vrot.slane %v899, %v948
        %v951 = vunpack.c.l.s4 1414812756
        %v952 = vunpack.c.0.s8 %v951
        %v953 = vlaneseq
        %v954 = vshrl.u32 %v953, 7
        %v955 = vsub.s32 %v952, %v954
        %v956 = vrot.slane %v899, %v955
        %v958 = vunpack.c.l.s4 1987475062
        %v959 = vunpack.c.0.s8 %v958
        %v960 = vlaneseq
        %v961 = vshrl.u32 %v960, 7
        %v962 = vsub.s32 %v959, %v961
        %v963 = vrot.slane %v899, %v962
        %v965 = vunpack.c.l.s4 269488144
        %v966 = vunpack.c.0.s8 %v965
        %v967 = vlaneseq
        %v968 = vshrl.u32 %v967, 7
        %v969 = vsub.s32 %v966, %v968
        %v970 = vrot.slane %v903, %v969
        %v972 = vunpack.c.l.s4 842150450
        %v973 = vunpack.c.0.s8 %v972
        %v974 = vlaneseq
        %v975 = vshrl.u32 %v974, 7
        %v976 = vsub.s32 %v973, %v975
        %v977 = vrot.slane %v903, %v976
        %v979 = vunpack.c.l.s4 1414812756
        %v980 = vunpack.c.0.s8 %v979
        %v981 = vlaneseq
        %v982 = vshrl.u32 %v981, 7
        %v983 = vsub.s32 %v980, %v982
        %v984 = vrot.slane %v903, %v983
        %v986 = vunpack.c.l.s4 1987475062
        %v987 = vunpack.c.0.s8 %v986
        %v988 = vlaneseq
        %v989 = vshrl.u32 %v988, 7
        %v990 = vsub.s32 %v987, %v989
        %v991 = vrot.slane %v903, %v990
        %v993 = vunpack.c.l.s4 269488144
        %v994 = vunpack.c.0.s8 %v993
        %v995 = vlaneseq
        %v996 = vshrl.u32 %v995, 7
        %v997 = vsub.s32 %v994, %v996
        %v998 = vrot.slane %v907, %v997
        %v1000 = vunpack.c.l.s4 842150450
        %v1001 = vunpack.c.0.s8 %v1000
        %v1002 = vlaneseq
        %v1003 = vshrl.u32 %v1002, 7
        %v1004 = vsub.s32 %v1001, %v1003
        %v1005 = vrot.slane %v907, %v1004
        %v1007 = vunpack.c.l.s4 1414812756
        %v1008 = vunpack.c.0.s8 %v1007
        %v1009 = vlaneseq
        %v1010 = vshrl.u32 %v1009, 7
        %v1011 = vsub.s32 %v1008, %v1010
        %v1012 = vrot.slane %v907, %v1011
        %v1014 = vunpack.c.l.s4 1987475062
        %v1015 = vunpack.c.0.s8 %v1014
        %v1016 = vlaneseq
        %v1017 = vshrl.u32 %v1016, 7
        %v1018 = vsub.s32 %v1015, %v1017
        %v1019 = vrot.slane %v907, %v1018
        %v1036 = vmul.f32 %v491, %v914
        %v1037 = vmul.f32 %v492, %v921
        %v1038 = vmul.f32 %v493, %v928
        %v1039 = vmul.f32 %v494, %v935
        %v1040 = vmul.f32 %v491, %v942
        %v1041 = vmul.f32 %v492, %v949
        %v1042 = vmul.f32 %v493, %v956
        %v1043 = vmul.f32 %v494, %v963
        %v1044 = vmul.f32 %v495, %v970
        %v1045 = vmul.f32 %v496, %v977
        %v1046 = vmul.f32 %v497, %v984
        %v1047 = vmul.f32 %v498, %v991
        %v1048 = vmul.f32 %v495, %v998
        %v1049 = vmul.f32 %v496, %v1005
        %v1050 = vmul.f32 %v497, %v1012
        %v1051 = vmul.f32 %v498, %v1019
        %v1068 = vcombine.low %v1036, %v1037
        %v1069 = vcombine.low %v1038, %v1039
        %v1071 = vunpack.c.l.s4 1983009808
        %v1072 = vunpack.c.0.s8 %v1071
        %v1073 = vlaneseq
        %v1074 = vshrl.u32 %v1073, 7
        %v1075 = vsub.s32 %v1072, %v1074
        %v1076 = vrot.slane %v1068, %v1075
        %v1078 = vunpack.c.l.s4 1983009808
        %v1079 = vunpack.c.0.s8 %v1078
        %v1080 = vlaneseq
        %v1081 = vshrl.u32 %v1080, 7
        %v1082 = vsub.s32 %v1079, %v1081
        %v1083 = vrot.slane %v1069, %v1082
        %v1084 = vcombine.low %v1076, %v1083
        %v1085 = vcombine.low %v1040, %v1041
        %v1086 = vcombine.low %v1042, %v1043
        %v1088 = vunpack.c.l.s4 1983009808
        %v1089 = vunpack.c.0.s8 %v1088
        %v1090 = vlaneseq
        %v1091 = vshrl.u32 %v1090, 7
        %v1092 = vsub.s32 %v1089, %v1091
        %v1093 = vrot.slane %v1085, %v1092
        %v1095 = vunpack.c.l.s4 1983009808
        %v1096 = vunpack.c.0.s8 %v1095
        %v1097 = vlaneseq
        %v1098 = vshrl.u32 %v1097, 7
        %v1099 = vsub.s32 %v1096, %v1098
        %v1100 = vrot.slane %v1086, %v1099
        %v1101 = vcombine.low %v1093, %v1100
        %v1102 = vcombine.low %v1044, %v1045
        %v1103 = vcombine.low %v1046, %v1047
        %v1105 = vunpack.c.l.s4 1983009808
        %v1106 = vunpack.c.0.s8 %v1105
        %v1107 = vlaneseq
        %v1108 = vshrl.u32 %v1107, 7
        %v1109 = vsub.s32 %v1106, %v1108
        %v1110 = vrot.slane %v1102, %v1109
        %v1112 = vunpack.c.l.s4 1983009808
        %v1113 = vunpack.c.0.s8 %v1112
        %v1114 = vlaneseq
        %v1115 = vshrl.u32 %v1114, 7
        %v1116 = vsub.s32 %v1113, %v1115
        %v1117 = vrot.slane %v1103, %v1116
        %v1118 = vcombine.low %v1110, %v1117
        %v1119 = vcombine.low %v1048, %v1049
        %v1120 = vcombine.low %v1050, %v1051
        %v1122 = vunpack.c.l.s4 1983009808
        %v1123 = vunpack.c.0.s8 %v1122
        %v1124 = vlaneseq
        %v1125 = vshrl.u32 %v1124, 7
        %v1126 = vsub.s32 %v1123, %v1125
        %v1127 = vrot.slane %v1119, %v1126
        %v1129 = vunpack.c.l.s4 1983009808
        %v1130 = vunpack.c.0.s8 %v1129
        %v1131 = vlaneseq
        %v1132 = vshrl.u32 %v1131, 7
        %v1133 = vsub.s32 %v1130, %v1132
        %v1134 = vrot.slane %v1120, %v1133
        %v1135 = vcombine.low %v1127, %v1134
        %v1140 = vadd.f32 %v888, %v1084
        %v1141 = vadd.f32 %v889, %v1101
        %v1142 = vadd.f32 %v890, %v1118
        %v1143 = vadd.f32 %v891, %v1135
        %v1144 = vpack.c.bf16 %v1140, %v1140
        %v1145 = vpack.c.bf16 %v1141, %v1141
        %v1146 = vpack.c.bf16 %v1142, %v1142
        %v1147 = vpack.c.bf16 %v1143, %v1143
        %vm1148 = vcmask 125952
        %1149 = vst.msk [vmem:[%s358] sm:$0xf] %vm1148, %v1144
        %1150 = vst.msk [vmem:[%s358 + $0x4] sm:$0xf] %vm1148, %v1145
        %1151 = vst.msk [vmem:[%s358 + $0x8] sm:$0xf] %vm1148, %v1146
        %1152 = vst.msk [vmem:[%s358 + $0xc] sm:$0xf] %vm1148, %v1147
        %s1153 = sand.u32 %s210, 1
        %s1154 = scalar_lea.sflag [#allocation4], %s1153
        %s1155 = sand.u32 %s210, 1
        %s1156 = smul.addr %s1155, 16
        %s1157 = scalar_lea.vmem [#allocation7], %s1156
        // Predicated region
        $region57: #{tpu_custom_call.1} parent=47 // pred_check
          %p1158 = pneg %p220
        $region58: #{tpu_custom_call.1} parent=47 // pred_check_branch
          %1160 = sbr.rel (%p1158) target = $region60
        $region59: #{tpu_custom_call.1} parent=47 // pred_region
          %s1161 = smul.u32 4, %s32
          %s1163 = ssub.s32 256, 256
          %1164 = vsyncadd %s1154, %s1163
          %s1165 = smul.addr %s31, 8
          %s1166 = sadd.s32 %s1161, %s1165
          %s1167 = smul.addr %s1166, 64
          %s1168 = scalar_lea.hbm %s7, %s1167
          %s1169 = sshll.u32 %s1157, 4
          %s1170 = int_to_ptr.vmem [resolvable:$true] %s1169
          %1175 = dma.vmem_to_hbm [thread:$0]  %s1170, 256, %s1168, %s1154, 64, 64, 4
        $region60: #{tpu_custom_call.1} parent=47 // pred_fallthru
          _
      $region48: #{tpu_custom_call.1} parent=5 // pred_fallthru
        _
      %p1176 = scmp.le.s32.totalorder 2, %s22
      // Predicated region
      $region61: #{tpu_custom_call.1} parent=5 // pred_check
        %p1177 = pneg %p1176
      $region62: #{tpu_custom_call.1} parent=5 // pred_check_branch
        %1179 = sbr.rel (%p1177) target = $region64
      $region63: #{tpu_custom_call.1} parent=5 // pred_region
        %s1180 = ssub.s32 %s22, 2
        // Predicated region
        $region65: #{tpu_custom_call.1} parent=63 // pred_check
          %p1181 = pneg %p226
        $region66: #{tpu_custom_call.1} parent=63 // pred_check_branch
          %1183 = sbr.rel (%p1181) target = $region68
        $region67: #{tpu_custom_call.1} parent=63 // pred_region
          %s1184 = sand.u32 %s211, 1
          %s1185 = scalar_lea.sflag [#allocation4], %s1184
          %s1186 = sand.u32 %s211, 1
          %s1187 = smul.addr %s1186, 16
          %s1188 = scalar_lea.vmem [#allocation7], %s1187
          %1189 = dma.done %s1185, 256
        $region68: #{tpu_custom_call.1} parent=63 // pred_fallthru
          _
      $region64: #{tpu_custom_call.1} parent=5 // pred_fallthru
        _
    $region6: #{tpu_custom_call.1} parent=1 // loop_footer
      %s26 = sadd.s32 1, %s22
    $region7: #{tpu_custom_call.1} parent=1 // loop_footer_branch
      %21 = sbr.rel target = $region3
    $region8: #{tpu_custom_call.1} parent=1 // loop_exit
      _
    %1190 = vsyncpa [#allocation3], 1
    %s1191 = scalar_lea.sflag [#allocation3], 1
    %1192 = vsyncpa %s1191, 1
    %1193 = vsyncpa [#allocation6], 1
    %s1194 = scalar_lea.sflag [#allocation6], 1
    %1195 = vsyncpa %s1194, 1
    %1196 = vsyncpa [#allocation4], 1
    %s1197 = scalar_lea.sflag [#allocation4], 1
    %1198 = vsyncpa %s1197, 1

</llo_original>
